<compile_context>
chip_gen: v7x
topology: tpu7x:2x2x1
jax: 0.10.0
libtpu: 0.0.40
codegen_flags: <defaults>
</compile_context>

<pallas_src>
import jax
import jax.numpy as jnp
from jax import lax
from jax.experimental import pallas as pl
from jax.experimental.pallas import tpu as pltpu


# ----------------------------- fused Down kernel -----------------------------
def _make_down_kernel(Wo, Lin, N, Cin2):
    """Wo: output width, Lin = (Rt+2)*Wo (tile + halo lanes), N = Rt*Wo."""

    def kernel(xt_ref, w1e_ref, b1e_ref, w2_ref, b2_ref, edge_ref,
               out_ref, zb_ref):
        t = pl.program_id(1)

        # ---- stage 1: 1x1 conv (+ folded PixelUnshuffle) + bias + LeakyReLU --
        # Computed for Rt + 2 rows: the 1-row halo above/below is re-computed
        # here from the overlapping input tile.
        x = xt_ref[0, 0]                                   # (G, Lin) bf16
        y = jnp.dot(w1e_ref[...], x, preferred_element_type=jnp.float32)
        y = y + b1e_ref[...]                               # (Cin2, 1) broadcast
        y = jnp.where(y > 0, y, 0.1 * y)                   # LeakyReLU(0.1), f32

        # ---- stage 2: flat row-major intermediate at offset 1 in VMEM --------
        # Halo rows hold real y (or zero at the image border): no full memset.
        znil = jnp.zeros((Cin2, 1), jnp.float32)
        zb_ref[:, 0:1] = znil                              # wrapped corner lanes
        zb_ref[:, Lin + 1:Lin + 2] = znil                  # (read, but masked)
        zb_ref[:, 1:Lin + 1] = y

        @pl.when(t == 0)                                   # image top boundary
        def _():
            zb_ref[:, 1:1 + Wo] = jnp.zeros((Cin2, Wo), jnp.float32)

        @pl.when(t == pl.num_programs(1) - 1)              # image bottom boundary
        def _():
            zb_ref[:, 1 + Lin - Wo:1 + Lin] = jnp.zeros((Cin2, Wo), jnp.float32)

        # ---- stage 3: 3x3 conv as 9 accumulating (Cout,Cin2)x(Cin2,N) matmuls
        # over shifted views (no patch tensor).  kw = 0 / 2 groups are masked
        # on the OUTPUT side (one (Cout, N) multiply each) to kill row wrap.
        lmask = edge_ref[0:1, :]                           # 0 where w == 0
        rmask = edge_ref[1:2, :]                           # 0 where w == Wo-1

        def kw_group(kw):
            acc = None
            for kh in range(3):
                off = kh * Wo + kw
                rhs = zb_ref[:, off:off + N].astype(jnp.bfloat16)  # bf16 MXU path
                d = jnp.dot(w2_ref[kh * 3 + kw], rhs,
                            preferred_element_type=jnp.float32)
                acc = d if acc is None else acc + d
            return acc

        res = kw_group(1) + kw_group(0) * lmask + kw_group(2) * rmask
        res = res + b2_ref[...]                            # (Cout, 1) broadcast
        out_ref[0] = res.astype(out_ref.dtype)             # (Cout, N) lane-dense

    return kernel


# ----------------------------- tiling heuristics ------------------------------
def _hw_budgets():
    """Per-generation (vmem_limit_bytes, per-step tile working-set budget)."""
    try:
        kind = jax.devices()[0].device_kind.lower()
    except Exception:
        kind = ""
    if "v5" in kind or "v6" in kind:               # 128 MiB physical VMEM
        return 100 * 1024 * 1024, 40 * 1024 * 1024
    return 48 * 1024 * 1024, 16 * 1024 * 1024      # v7x (64 MiB) / unknown


def _choose_tile_rows(Ho, Wo, G, Cin2, Cout, tile_budget_bytes):
    """Largest output-row tile whose working set fits the budget; the output
    block's lane width must be a multiple of 128 (or the whole image)."""
    # bf16 double-buffered input, f32 double-buffered output, f32 scratch + acc.
    per_lane = 5 * G + 16 * Cout + 9 * Cin2 + 32
    max_lanes = max(256, tile_budget_bytes // per_lane)
    if Ho * Wo <= max_lanes:
        return Ho
    best = None
    for rt in range(1, Ho + 1):
        if Ho % rt == 0 and rt * Wo <= max_lanes and (rt * Wo) % 128 == 0:
            best = rt
    if best is not None:
        return best
    # TODO(synk): ragged last tile (pad Ho) so awkward Ho still gets bounded tiles.
    return Ho


# ----------------------------- Down forward ----------------------------------
def down_forward(x, w1_pt, b1, w2_pt, b2):
    """x: (B, dims, H, W) NCHW.  Weights in PyTorch layout:
       w1_pt: (dims//2, dims, 1, 1), b1: (dims//2,),
       w2_pt: (dims*2, dims*2, 3, 3), b2: (dims*2,)."""
    B, Cin, H, W = x.shape
    assert H % 2 == 0 and W % 2 == 0, "PixelUnshuffle(2) needs even H, W"
    Chalf = w1_pt.shape[0]
    Cin2 = 4 * Chalf                       # channels after unshuffle (= 2*dims)
    Cout = w2_pt.shape[0]                  # = 2*dims
    Ho, Wo = H // 2, W // 2
    G = 4 * Cin                            # parity-grouped input channels

    vmem_limit, tile_budget = _hw_budgets()
    Rt = _choose_tile_rows(Ho, Wo, G, Cin2, Cout, tile_budget)
    T = Ho // Rt                           # row tiles per image
    N = Rt * Wo                            # output lanes per tile
    Lin = (Rt + 2) * Wo                    # intermediate lanes per tile (w/ halo)

    # ---- weight prep (tiny, fused by XLA); PixelUnshuffle folded into w1e ----
    w1 = w1_pt[:, :, 0, 0]                                        # (Chalf, Cin)
    eye4 = jnp.eye(4, dtype=w1.dtype)
    # w1e[h*4+p, p*Cin+c] = w1[h, c]  -> unshuffle baked into the 1x1 weights
    w1e = jnp.einsum('hc,pq->hpqc', w1, eye4).reshape(Cin2, G).astype(jnp.bfloat16)
    b1e = jnp.repeat(b1, 4).reshape(Cin2, 1).astype(jnp.float32)
    # w2s[kh*3+kw, o, c] = w2_pt[o, c, kh, kw]
    w2s = jnp.transpose(w2_pt, (2, 3, 0, 1)).reshape(9, Cout, Cin2)
    w2s = w2s.astype(jnp.bfloat16)
    b2c = b2.reshape(Cout, 1).astype(jnp.float32)

    # Row-wrap keep-masks for the kw = 0 / 2 tap groups (1 inside, 0 at wrap).
    colw = jnp.arange(N, dtype=jnp.int32) % Wo
    edge = jnp.stack([(colw != 0), (colw != Wo - 1)]).astype(jnp.float32)  # (2, N)

    # ---- input relayout: NCHW -> parity-grouped, overlapping row tiles -------
    # xg[b, (dy*2+dx)*Cin + c, r, w] = x[b, c, 2r+dy, 2w+dx]
    xg = x.reshape(B, Cin, Ho, 2, Wo, 2)
    xg = jnp.transpose(xg, (0, 3, 5, 1, 2, 4)).reshape(B, G, Ho, Wo)
    xp = jnp.pad(xg, ((0, 0), (0, 0), (1, 1), (0, 0)))            # 1-row halo
    rows = jnp.arange(T)[:, None] * Rt + jnp.arange(Rt + 2)[None, :]
    xt = xp[:, :, rows, :]                                        # (B, G, T, Rt+2, Wo)
    xt = jnp.transpose(xt, (0, 2, 1, 3, 4)).reshape(B, T, G, Lin)
    xt = xt.astype(jnp.bfloat16)
    # TODO(synk): have the upstream producer emit this layout directly; the
    #             regroup is an extra HBM round trip of x.

    kernel = _make_down_kernel(Wo, Lin, N, Cin2)

    out = pl.pallas_call(
        kernel,
        out_shape=jax.ShapeDtypeStruct((B, Cout, Ho * Wo), x.dtype),
        grid_spec=pltpu.PrefetchScalarGridSpec(
            num_scalar_prefetch=0,
            grid=(B, T),
            in_specs=[
                pl.BlockSpec((1, 1, G, Lin), lambda b, t: (b, t, 0, 0)),  # xt
                pl.BlockSpec((Cin2, G), lambda b, t: (0, 0)),             # w1e
                pl.BlockSpec((Cin2, 1), lambda b, t: (0, 0)),             # b1e
                pl.BlockSpec((9, Cout, Cin2), lambda b, t: (0, 0, 0)),    # w2s
                pl.BlockSpec((Cout, 1), lambda b, t: (0, 0)),             # b2
                pl.BlockSpec((2, N), lambda b, t: (0, 0)),                # edge masks
            ],
            out_specs=pl.BlockSpec((1, Cout, N), lambda b, t: (b, 0, t)),
            scratch_shapes=[pltpu.VMEM((Cin2, Lin + 2), jnp.float32)],
        ),
        compiler_params=pltpu.CompilerParams(
            dimension_semantics=("parallel", "parallel"),
            vmem_limit_bytes=vmem_limit,
        ),
    )(xt, w1e, b1e, w2s, b2c, edge)

    return out.reshape(B, Cout, Ho, Wo)                  # NCHW, no transpose


# ----------------------------- pure-JAX reference ----------------------------
def down_reference(x, w1_pt, b1, w2_pt, b2):
    # conv 1x1 + LeakyReLU
    y = jnp.einsum('bchw,oc->bohw', x, w1_pt[:, :, 0, 0]) + b1[None, :, None, None]
    y = jnp.where(y > 0, y, 0.1 * y)
    # pixel unshuffle (NCHW, PyTorch semantics)
    B, C, H, W = y.shape
    y = y.reshape(B, C, H // 2, 2, W // 2, 2)
    y = jnp.transpose(y, (0, 1, 3, 5, 2, 4)).reshape(B, C * 4, H // 2, W // 2)
    # conv 3x3 pad 1
    out = lax.conv_general_dilated(
        y, w2_pt, window_strides=(1, 1), padding=((1, 1), (1, 1)),
        dimension_numbers=('NCHW', 'OIHW', 'NCHW'))
    return out + b2[None, :, None, None]


if __name__ == "__main__":
    dims, B, H, W = 4, 2, 16, 16
    key = jax.random.PRNGKey(0)
    kx, k1w, k1b, k2w, k2b = jax.random.split(key, 5)

    x = jax.random.normal(kx, (B, dims, H, W), jnp.float32)

    # Deterministic synthetic parameters (PyTorch shapes).
    w1_pt = 0.1 * jax.random.normal(k1w, (dims // 2, dims, 1, 1), jnp.float32)
    b1 = 0.1 * jax.random.normal(k1b, (dims // 2,), jnp.float32)
    w2_pt = 0.1 * jax.random.normal(k2w, (dims * 2, dims * 2, 3, 3), jnp.float32)
    b2 = 0.1 * jax.random.normal(k2b, (dims * 2,), jnp.float32)

    fwd = jax.jit(down_forward)
    out = jax.block_until_ready(fwd(x, w1_pt, b1, w2_pt, b2))
    ref = jax.block_until_ready(down_reference(x, w1_pt, b1, w2_pt, b2))

    assert out.shape == (B, dims * 2, H // 2, W // 2), out.shape
    max_err = float(jnp.max(jnp.abs(out - ref)))
    assert max_err < 5e-2, max_err   # bf16 MXU operands vs f32 reference
    print("KERNEL_OK")
</pallas_src>

<mosaic_0001>
module attributes {stable_mosaic.version = 11 : i64} {
  func.func @kernel(%arg0: i32, %arg1: i32, %arg2: memref<1x1x16x80xbf16, #tpu.memory_space<vmem>>, %arg3: memref<8x16xbf16, #tpu.memory_space<vmem>>, %arg4: memref<8x1xf32, #tpu.memory_space<vmem>>, %arg5: memref<9x8x8xbf16, #tpu.memory_space<vmem>>, %arg6: memref<8x1xf32, #tpu.memory_space<vmem>>, %arg7: memref<2x64xf32, #tpu.memory_space<vmem>>, %arg8: memref<1x8x64xf32, #tpu.memory_space<vmem>>, %arg9: memref<8x82xf32, #tpu.memory_space<vmem>>) attributes {dimension_semantics = [#tpu.dimension_semantics<parallel>, #tpu.dimension_semantics<parallel>], iteration_bounds = array<i64: 2, 1>, scalar_prefetch = 0 : i64, scratch_operands = 1 : i64, tpu.core_type = #tpu.core_type<tc>, window_params = [{transform_indices = @transform_0, window_bounds = array<i64: 1, 1, 16, 80>}, {pipeline_mode = #tpu.pipeline_mode<synchronous>, transform_indices = @transform_1, window_bounds = array<i64: 8, 16>}, {pipeline_mode = #tpu.pipeline_mode<synchronous>, transform_indices = @transform_2, window_bounds = array<i64: 8, 1>}, {pipeline_mode = #tpu.pipeline_mode<synchronous>, transform_indices = @transform_3, window_bounds = array<i64: 9, 8, 8>}, {pipeline_mode = #tpu.pipeline_mode<synchronous>, transform_indices = @transform_4, window_bounds = array<i64: 8, 1>}, {pipeline_mode = #tpu.pipeline_mode<synchronous>, transform_indices = @transform_5, window_bounds = array<i64: 2, 64>}, {transform_indices = @transform_6, window_bounds = array<i64: 1, 8, 64>}]} {
    %c0 = arith.constant 0 : index
    %c0_0 = arith.constant 0 : index
    %c0_1 = arith.constant 0 : index
    %c0_2 = arith.constant 0 : index
    %0 = vector.load %arg2[%c0, %c0_0, %c0_1, %c0_2] : memref<1x1x16x80xbf16, #tpu.memory_space<vmem>>, vector<1x1x16x80xbf16>
    %1 = vector.shape_cast %0 : vector<1x1x16x80xbf16> to vector<16x80xbf16>
    %c0_3 = arith.constant 0 : index
    %c0_4 = arith.constant 0 : index
    %2 = vector.load %arg3[%c0_3, %c0_4] : memref<8x16xbf16, #tpu.memory_space<vmem>>, vector<8x16xbf16>
    %cst = arith.constant dense<0.000000e+00> : vector<8x80xf32>
    %3 = tpu.matmul %2, %1, %cst {dimension_numbers = #tpu.dot_dimension_numbers<[1], [0], [0], [1], [0, 0, 1, 1], [], []>} : vector<8x16xbf16>, vector<16x80xbf16>, vector<8x80xf32> -> vector<8x80xf32>
    %c0_5 = arith.constant 0 : index
    %c0_6 = arith.constant 0 : index
    %4 = vector.load %arg4[%c0_5, %c0_6] : memref<8x1xf32, #tpu.memory_space<vmem>>, vector<8x1xf32>
    %5 = vector.broadcast %4 : vector<8x1xf32> to vector<8x80xf32>
    %6 = arith.addf %3, %5 : vector<8x80xf32>
    %cst_7 = arith.constant 0.000000e+00 : f32
    %7 = vector.broadcast %cst_7 : f32 to vector<8x80xf32>
    %8 = arith.cmpf ogt, %6, %7 : vector<8x80xf32>
    %cst_8 = arith.constant 1.000000e-01 : f32
    %9 = vector.broadcast %cst_8 : f32 to vector<8x80xf32>
    %10 = arith.mulf %9, %6 : vector<8x80xf32>
    %11 = arith.select %8, %6, %10 : vector<8x80xi1>, vector<8x80xf32>
    %cst_9 = arith.constant 0.000000e+00 : f32
    %12 = vector.broadcast %cst_9 : f32 to vector<8x1xf32>
    %c0_10 = arith.constant 0 : index
    %c0_11 = arith.constant 0 : index
    %13 = vector.load %arg9[%c0_10, %c0_11] : memref<8x82xf32, #tpu.memory_space<vmem>>, vector<8x1xf32>
    tpu.vector_store %arg9[%c0_10, %c0_11], %12 {strides = array<i32>} : memref<8x82xf32, #tpu.memory_space<vmem>>, vector<8x1xf32>,
    %c0_12 = arith.constant 0 : index
    %c81 = arith.constant 81 : index
    %14 = vector.load %arg9[%c0_12, %c81] : memref<8x82xf32, #tpu.memory_space<vmem>>, vector<8x1xf32>
    tpu.vector_store %arg9[%c0_12, %c81], %12 {strides = array<i32>} : memref<8x82xf32, #tpu.memory_space<vmem>>, vector<8x1xf32>,
    %c0_13 = arith.constant 0 : index
    %c1 = arith.constant 1 : index
    %15 = vector.load %arg9[%c0_13, %c1] : memref<8x82xf32, #tpu.memory_space<vmem>>, vector<8x80xf32>
    tpu.vector_store %arg9[%c0_13, %c1], %11 {strides = array<i32>} : memref<8x82xf32, #tpu.memory_space<vmem>>, vector<8x80xf32>,
    %c0_i32 = arith.constant 0 : i32
    %16 = arith.cmpi eq, %arg1, %c0_i32 : i32
    %17 = arith.extui %16 : i1 to i32
    %c0_i32_14 = arith.constant 0 : i32
    %18 = arith.cmpi ne, %17, %c0_i32_14 : i32
    scf.if %18 {
      %cst_68 = arith.constant 0.000000e+00 : f32
      %87 = vector.broadcast %cst_68 : f32 to vector<8x8xf32>
      %c0_69 = arith.constant 0 : index
      %c1_70 = arith.constant 1 : index
      %88 = vector.load %arg9[%c0_69, %c1_70] : memref<8x82xf32, #tpu.memory_space<vmem>>, vector<8x8xf32>
      tpu.vector_store %arg9[%c0_69, %c1_70], %87 {strides = array<i32>} : memref<8x82xf32, #tpu.memory_space<vmem>>, vector<8x8xf32>,
    } else {
    }
    %c0_i32_15 = arith.constant 0 : i32
    %19 = arith.cmpi eq, %arg1, %c0_i32_15 : i32
    %20 = arith.extui %19 : i1 to i32
    %c0_i32_16 = arith.constant 0 : i32
    %21 = arith.cmpi ne, %20, %c0_i32_16 : i32
    scf.if %21 {
      %cst_68 = arith.constant 0.000000e+00 : f32
      %87 = vector.broadcast %cst_68 : f32 to vector<8x8xf32>
      %c0_69 = arith.constant 0 : index
      %c73 = arith.constant 73 : index
      %88 = vector.load %arg9[%c0_69, %c73] : memref<8x82xf32, #tpu.memory_space<vmem>>, vector<8x8xf32>
      tpu.vector_store %arg9[%c0_69, %c73], %87 {strides = array<i32>} : memref<8x82xf32, #tpu.memory_space<vmem>>, vector<8x8xf32>,
    } else {
    }
    %c0_17 = arith.constant 0 : index
    %c0_18 = arith.constant 0 : index
    %22 = vector.load %arg7[%c0_17, %c0_18] : memref<2x64xf32, #tpu.memory_space<vmem>>, vector<1x64xf32>
    %c1_19 = arith.constant 1 : index
    %c0_20 = arith.constant 0 : index
    %23 = vector.load %arg7[%c1_19, %c0_20] : memref<2x64xf32, #tpu.memory_space<vmem>>, vector<1x64xf32>
    %c0_21 = arith.constant 0 : index
    %c1_22 = arith.constant 1 : index
    %24 = vector.load %arg9[%c0_21, %c1_22] : memref<8x82xf32, #tpu.memory_space<vmem>>, vector<8x64xf32>
    %25 = arith.truncf %24 : vector<8x64xf32> to vector<8x64xbf16>
    %c1_23 = arith.constant 1 : index
    %c0_24 = arith.constant 0 : index
    %c0_25 = arith.constant 0 : index
    %26 = vector.load %arg5[%c1_23, %c0_24, %c0_25] : memref<9x8x8xbf16, #tpu.memory_space<vmem>>, vector<1x8x8xbf16>
    %27 = vector.shape_cast %26 : vector<1x8x8xbf16> to vector<8x8xbf16>
    %cst_26 = arith.constant dense<0.000000e+00> : vector<8x64xf32>
    %28 = tpu.matmul %27, %25, %cst_26 {dimension_numbers = #tpu.dot_dimension_numbers<[1], [0], [0], [1], [0, 0, 1, 1], [], []>} : vector<8x8xbf16>, vector<8x64xbf16>, vector<8x64xf32> -> vector<8x64xf32>
    %c0_27 = arith.constant 0 : index
    %c9 = arith.constant 9 : index
    %29 = vector.load %arg9[%c0_27, %c9] : memref<8x82xf32, #tpu.memory_space<vmem>>, vector<8x64xf32>
    %30 = arith.truncf %29 : vector<8x64xf32> to vector<8x64xbf16>
    %c4 = arith.constant 4 : index
    %c0_28 = arith.constant 0 : index
    %c0_29 = arith.constant 0 : index
    %31 = vector.load %arg5[%c4, %c0_28, %c0_29] : memref<9x8x8xbf16, #tpu.memory_space<vmem>>, vector<1x8x8xbf16>
    %32 = vector.shape_cast %31 : vector<1x8x8xbf16> to vector<8x8xbf16>
    %cst_30 = arith.constant dense<0.000000e+00> : vector<8x64xf32>
    %33 = tpu.matmul %32, %30, %cst_30 {dimension_numbers = #tpu.dot_dimension_numbers<[1], [0], [0], [1], [0, 0, 1, 1], [], []>} : vector<8x8xbf16>, vector<8x64xbf16>, vector<8x64xf32> -> vector<8x64xf32>
    %34 = arith.addf %28, %33 : vector<8x64xf32>
    %c0_31 = arith.constant 0 : index
    %c17 = arith.constant 17 : index
    %35 = vector.load %arg9[%c0_31, %c17] : memref<8x82xf32, #tpu.memory_space<vmem>>, vector<8x64xf32>
    %36 = arith.truncf %35 : vector<8x64xf32> to vector<8x64xbf16>
    %c7 = arith.constant 7 : index
    %c0_32 = arith.constant 0 : index
    %c0_33 = arith.constant 0 : index
    %37 = vector.load %arg5[%c7, %c0_32, %c0_33] : memref<9x8x8xbf16, #tpu.memory_space<vmem>>, vector<1x8x8xbf16>
    %38 = vector.shape_cast %37 : vector<1x8x8xbf16> to vector<8x8xbf16>
    %cst_34 = arith.constant dense<0.000000e+00> : vector<8x64xf32>
    %39 = tpu.matmul %38, %36, %cst_34 {dimension_numbers = #tpu.dot_dimension_numbers<[1], [0], [0], [1], [0, 0, 1, 1], [], []>} : vector<8x8xbf16>, vector<8x64xbf16>, vector<8x64xf32> -> vector<8x64xf32>
    %40 = arith.addf %34, %39 : vector<8x64xf32>
    %c0_35 = arith.constant 0 : index
    %c0_36 = arith.constant 0 : index
    %41 = vector.load %arg9[%c0_35, %c0_36] : memref<8x82xf32, #tpu.memory_space<vmem>>, vector<8x64xf32>
    %42 = arith.truncf %41 : vector<8x64xf32> to vector<8x64xbf16>
    %c0_37 = arith.constant 0 : index
    %c0_38 = arith.constant 0 : index
    %c0_39 = arith.constant 0 : index
    %43 = vector.load %arg5[%c0_37, %c0_38, %c0_39] : memref<9x8x8xbf16, #tpu.memory_space<vmem>>, vector<1x8x8xbf16>
    %44 = vector.shape_cast %43 : vector<1x8x8xbf16> to vector<8x8xbf16>
    %cst_40 = arith.constant dense<0.000000e+00> : vector<8x64xf32>
    %45 = tpu.matmul %44, %42, %cst_40 {dimension_numbers = #tpu.dot_dimension_numbers<[1], [0], [0], [1], [0, 0, 1, 1], [], []>} : vector<8x8xbf16>, vector<8x64xbf16>, vector<8x64xf32> -> vector<8x64xf32>
    %c0_41 = arith.constant 0 : index
    %c8 = arith.constant 8 : index
    %46 = vector.load %arg9[%c0_41, %c8] : memref<8x82xf32, #tpu.memory_space<vmem>>, vector<8x64xf32>
    %47 = arith.truncf %46 : vector<8x64xf32> to vector<8x64xbf16>
    %c3 = arith.constant 3 : index
    %c0_42 = arith.constant 0 : index
    %c0_43 = arith.constant 0 : index
    %48 = vector.load %arg5[%c3, %c0_42, %c0_43] : memref<9x8x8xbf16, #tpu.memory_space<vmem>>, vector<1x8x8xbf16>
    %49 = vector.shape_cast %48 : vector<1x8x8xbf16> to vector<8x8xbf16>
    %cst_44 = arith.constant dense<0.000000e+00> : vector<8x64xf32>
    %50 = tpu.matmul %49, %47, %cst_44 {dimension_numbers = #tpu.dot_dimension_numbers<[1], [0], [0], [1], [0, 0, 1, 1], [], []>} : vector<8x8xbf16>, vector<8x64xbf16>, vector<8x64xf32> -> vector<8x64xf32>
    %51 = arith.addf %45, %50 : vector<8x64xf32>
    %c0_45 = arith.constant 0 : index
    %c16 = arith.constant 16 : index
    %52 = vector.load %arg9[%c0_45, %c16] : memref<8x82xf32, #tpu.memory_space<vmem>>, vector<8x64xf32>
    %53 = arith.truncf %52 : vector<8x64xf32> to vector<8x64xbf16>
    %c6 = arith.constant 6 : index
    %c0_46 = arith.constant 0 : index
    %c0_47 = arith.constant 0 : index
    %54 = vector.load %arg5[%c6, %c0_46, %c0_47] : memref<9x8x8xbf16, #tpu.memory_space<vmem>>, vector<1x8x8xbf16>
    %55 = vector.shape_cast %54 : vector<1x8x8xbf16> to vector<8x8xbf16>
    %cst_48 = arith.constant dense<0.000000e+00> : vector<8x64xf32>
    %56 = tpu.matmul %55, %53, %cst_48 {dimension_numbers = #tpu.dot_dimension_numbers<[1], [0], [0], [1], [0, 0, 1, 1], [], []>} : vector<8x8xbf16>, vector<8x64xbf16>, vector<8x64xf32> -> vector<8x64xf32>
    %57 = arith.addf %51, %56 : vector<8x64xf32>
    %58 = vector.broadcast %22 : vector<1x64xf32> to vector<8x64xf32>
    %59 = arith.mulf %57, %58 : vector<8x64xf32>
    %60 = arith.addf %40, %59 : vector<8x64xf32>
    %c0_49 = arith.constant 0 : index
    %c2 = arith.constant 2 : index
    %61 = vector.load %arg9[%c0_49, %c2] : memref<8x82xf32, #tpu.memory_space<vmem>>, vector<8x64xf32>
    %62 = arith.truncf %61 : vector<8x64xf32> to vector<8x64xbf16>
    %c2_50 = arith.constant 2 : index
    %c0_51 = arith.constant 0 : index
    %c0_52 = arith.constant 0 : index
    %63 = vector.load %arg5[%c2_50, %c0_51, %c0_52] : memref<9x8x8xbf16, #tpu.memory_space<vmem>>, vector<1x8x8xbf16>
    %64 = vector.shape_cast %63 : vector<1x8x8xbf16> to vector<8x8xbf16>
    %cst_53 = arith.constant dense<0.000000e+00> : vector<8x64xf32>
    %65 = tpu.matmul %64, %62, %cst_53 {dimension_numbers = #tpu.dot_dimension_numbers<[1], [0], [0], [1], [0, 0, 1, 1], [], []>} : vector<8x8xbf16>, vector<8x64xbf16>, vector<8x64xf32> -> vector<8x64xf32>
    %c0_54 = arith.constant 0 : index
    %c10 = arith.constant 10 : index
    %66 = vector.load %arg9[%c0_54, %c10] : memref<8x82xf32, #tpu.memory_space<vmem>>, vector<8x64xf32>
    %67 = arith.truncf %66 : vector<8x64xf32> to vector<8x64xbf16>
    %c5 = arith.constant 5 : index
    %c0_55 = arith.constant 0 : index
    %c0_56 = arith.constant 0 : index
    %68 = vector.load %arg5[%c5, %c0_55, %c0_56] : memref<9x8x8xbf16, #tpu.memory_space<vmem>>, vector<1x8x8xbf16>
    %69 = vector.shape_cast %68 : vector<1x8x8xbf16> to vector<8x8xbf16>
    %cst_57 = arith.constant dense<0.000000e+00> : vector<8x64xf32>
    %70 = tpu.matmul %69, %67, %cst_57 {dimension_numbers = #tpu.dot_dimension_numbers<[1], [0], [0], [1], [0, 0, 1, 1], [], []>} : vector<8x8xbf16>, vector<8x64xbf16>, vector<8x64xf32> -> vector<8x64xf32>
    %71 = arith.addf %65, %70 : vector<8x64xf32>
    %c0_58 = arith.constant 0 : index
    %c18 = arith.constant 18 : index
    %72 = vector.load %arg9[%c0_58, %c18] : memref<8x82xf32, #tpu.memory_space<vmem>>, vector<8x64xf32>
    %73 = arith.truncf %72 : vector<8x64xf32> to vector<8x64xbf16>
    %c8_59 = arith.constant 8 : index
    %c0_60 = arith.constant 0 : index
    %c0_61 = arith.constant 0 : index
    %74 = vector.load %arg5[%c8_59, %c0_60, %c0_61] : memref<9x8x8xbf16, #tpu.memory_space<vmem>>, vector<1x8x8xbf16>
    %75 = vector.shape_cast %74 : vector<1x8x8xbf16> to vector<8x8xbf16>
    %cst_62 = arith.constant dense<0.000000e+00> : vector<8x64xf32>
    %76 = tpu.matmul %75, %73, %cst_62 {dimension_numbers = #tpu.dot_dimension_numbers<[1], [0], [0], [1], [0, 0, 1, 1], [], []>} : vector<8x8xbf16>, vector<8x64xbf16>, vector<8x64xf32> -> vector<8x64xf32>
    %77 = arith.addf %71, %76 : vector<8x64xf32>
    %78 = vector.broadcast %23 : vector<1x64xf32> to vector<8x64xf32>
    %79 = arith.mulf %77, %78 : vector<8x64xf32>
    %80 = arith.addf %60, %79 : vector<8x64xf32>
    %c0_63 = arith.constant 0 : index
    %c0_64 = arith.constant 0 : index
    %81 = vector.load %arg6[%c0_63, %c0_64] : memref<8x1xf32, #tpu.memory_space<vmem>>, vector<8x1xf32>
    %82 = vector.broadcast %81 : vector<8x1xf32> to vector<8x64xf32>
    %83 = arith.addf %80, %82 : vector<8x64xf32>
    %c0_65 = arith.constant 0 : index
    %c0_66 = arith.constant 0 : index
    %c0_67 = arith.constant 0 : index
    %84 = vector.load %arg8[%c0_65, %c0_66, %c0_67] : memref<1x8x64xf32, #tpu.memory_space<vmem>>, vector<1x8x64xf32>
    %85 = vector.shape_cast %84 : vector<1x8x64xf32> to vector<8x64xf32>
    %86 = vector.shape_cast %83 : vector<8x64xf32> to vector<1x8x64xf32>
    tpu.vector_store %arg8[%c0_65, %c0_66, %c0_67], %86 {strides = array<i32>} : memref<1x8x64xf32, #tpu.memory_space<vmem>>, vector<1x8x64xf32>,
    return
  }
  func.func @transform_0(%arg0: i32, %arg1: i32) -> (i32, i32, i32, i32) {
    %c0_i32 = arith.constant 0 : i32
    %c0_i32_0 = arith.constant 0 : i32
    %c0_i32_1 = arith.constant 0 : i32
    return %arg0, %arg1, %c0_i32, %c0_i32_0 : i32, i32, i32, i32
  }
  func.func @transform_1(%arg0: i32, %arg1: i32) -> (i32, i32) {
    %c0_i32 = arith.constant 0 : i32
    %c0_i32_0 = arith.constant 0 : i32
    %c0_i32_1 = arith.constant 0 : i32
    return %c0_i32, %c0_i32_0 : i32, i32
  }
  func.func @transform_2(%arg0: i32, %arg1: i32) -> (i32, i32) {
    %c0_i32 = arith.constant 0 : i32
    %c0_i32_0 = arith.constant 0 : i32
    %c0_i32_1 = arith.constant 0 : i32
    return %c0_i32, %c0_i32_0 : i32, i32
  }
  func.func @transform_3(%arg0: i32, %arg1: i32) -> (i32, i32, i32) {
    %c0_i32 = arith.constant 0 : i32
    %c0_i32_0 = arith.constant 0 : i32
    %c0_i32_1 = arith.constant 0 : i32
    %c0_i32_2 = arith.constant 0 : i32
    return %c0_i32, %c0_i32_0, %c0_i32_1 : i32, i32, i32
  }
  func.func @transform_4(%arg0: i32, %arg1: i32) -> (i32, i32) {
    %c0_i32 = arith.constant 0 : i32
    %c0_i32_0 = arith.constant 0 : i32
    %c0_i32_1 = arith.constant 0 : i32
    return %c0_i32, %c0_i32_0 : i32, i32
  }
  func.func @transform_5(%arg0: i32, %arg1: i32) -> (i32, i32) {
    %c0_i32 = arith.constant 0 : i32
    %c0_i32_0 = arith.constant 0 : i32
    %c0_i32_1 = arith.constant 0 : i32
    return %c0_i32, %c0_i32_0 : i32, i32
  }
  func.func @transform_6(%arg0: i32, %arg1: i32) -> (i32, i32, i32) {
    %c0_i32 = arith.constant 0 : i32
    %c0_i32_0 = arith.constant 0 : i32
    return %arg0, %c0_i32, %arg1 : i32, i32, i32
  }
}

</mosaic_0001>

<llo_original>
// kernel: down_forward.1
$region0: #{down_forward.1}
  #allocation0 [shape = 'u32[]', space=smem, size = 0x4, offset = 0x4, fixed_abs, tag = 'smem constant byte address 0x4 - core index']
  #allocation1 [shape = 'u32[144,128]{1,0:T(1,128)}', space=vmem, size = 0x12000, scoped, tag = 'internal scratch']
  #allocation2 [shape = 'f32[8,82]{1,0:T(8,128)}', space=vmem, size = 0x1000, scoped, tag = 'scratch operand']
  %s0 = inlined_call_operand.vmem [shape: bf16[2,1,16,80], index: 0, kind: input, shape index: {}]
  %s1 = inlined_call_operand.vmem [shape: bf16[8,16], index: 1, kind: input, shape index: {}]
  %s2 = inlined_call_operand.vmem [shape: f32[8,1], index: 2, kind: input, shape index: {}]
  %s3 = inlined_call_operand.vmem [shape: bf16[9,8,8], index: 3, kind: input, shape index: {}]
  %s4 = inlined_call_operand.vmem [shape: f32[8,1], index: 4, kind: input, shape index: {}]
  %s5 = inlined_call_operand.vmem [shape: f32[2,64], index: 5, kind: input, shape index: {}]
  %s6 = inlined_call_operand.vmem [shape: f32[2,8,64], index: 6, kind: output, shape index: {}]
  %s7 = sld [smem:[#allocation0]]
  $region61: #{down_forward.1} parent=0
    _
  %s9 = ssub.s32 1, %s7
  %s10 = scalar_select 0, %s9, %s7
  loop: start=0, step=1, limit=4
  $region2: #{down_forward.1} parent=0 // loop_pre_header
    _
  $region3: #{down_forward.1} parent=0 // loop_header
    %s12 = sphi 0, %s16
    %p13 = scmp.ge.s32.totalorder %s12, 4
    %s19 = sphi 0, %s31
    %s20 = sphi 0, %s27
    %s21 = sphi 0, %s19
    %s22 = sphi 0, %s20
    %s23 = sphi 0, %s21
    %s24 = sphi 0, %s22
    %s36 = sphi 0, %s38
    %s39 = sphi 0, %s36
    %s40 = sphi 0, %s39
    %s56 = sphi 0, %s40
    %s60 = sphi 0, %s60
    %s62 = sphi 0, %s60
    %s63 = sphi 0, %s62
    %s77 = sphi 0, %s63
    %s81 = sphi 0, %s81
    %s83 = sphi 0, %s81
    %s84 = sphi 0, %s83
    %s98 = sphi 0, %s84
    %s102 = sphi 0, %s102
    %s104 = sphi 0, %s102
    %s105 = sphi 0, %s104
    %s119 = sphi 0, %s105
    %s123 = sphi 0, %s123
    %s125 = sphi 0, %s123
    %s126 = sphi 0, %s125
    %s140 = sphi 0, %s126
    %s144 = sphi 0, %s144
    %s146 = sphi 0, %s144
    %s147 = sphi 0, %s146
    %s161 = sphi 0, %s147
    %s169 = sphi 0, %s171
    %s172 = sphi 0, %s169
    %s173 = sphi 0, %s172
    %s189 = sphi 0, %s173
  $region4: #{down_forward.1} parent=0 // loop_header_branch
    %15 = sbr.rel (%p13) target = $region8
  $region5: #{down_forward.1} parent=0 // loop_body
    %s17 = ssub.s32 %s12, 1
    %s18 = ssub.s32 %s12, 2
    %s25 = sadd.s32 1, %s20
    %p26 = scmp.ge.s32.totalorder %s25, 1
    %s27 = scalar_select %p26, 0, %s25
    %s28 = sadd.s32 1, %s19
    %s29 = scalar_select %p26, %s28, %s19
    %p30 = scmp.ge.s32.totalorder %s29, 2
    %s31 = scalar_select %p30, 0, %s29
    %s32 = ssub.s32 %s19, %s31
    %s33 = ssub.s32 %s20, %s27
    %s34 = sor.u32 %s32, %s33
    %p35 = scmp.eq.s32.totalorder %s34, 0
    %s37 = sadd.s32 %s36, 1
    %s38 = scalar_select %p35, %s36, %s37
    %p41 = pneg %p35
    %p42 = scmp.eq.s32.totalorder %s12, 1
    %p43 = por %p41, %p42
    %p44 = scmp.ne.s32.totalorder %s36, %s39
    %p45 = scmp.eq.s32.totalorder %s12, 0
    %p46 = por %p44, %p45
    %p47 = scmp.ne.s32.totalorder %s36, %s39
    %p48 = scmp.eq.s32.totalorder %s17, 1
    %p49 = por %p47, %p48
    %p50 = scmp.ne.s32.totalorder %s39, %s40
    %p51 = scmp.eq.s32.totalorder %s17, 0
    %p52 = por %p50, %p51
    %p53 = scmp.ne.s32.totalorder %s39, %s40
    %p54 = scmp.eq.s32.totalorder %s18, 1
    %p55 = por %p53, %p54
    %p57 = scmp.ne.s32.totalorder %s40, %s56
    %p58 = scmp.eq.s32.totalorder %s18, 0
    %p59 = por %p57, %p58
    %s61 = sadd.s32 %s60, 1
    %p64 = scmp.eq.s32.totalorder %s12, 1
    %p65 = scmp.ne.s32.totalorder %s60, %s62
    %p66 = scmp.eq.s32.totalorder %s12, 0
    %p67 = por %p65, %p66
    %p68 = scmp.ne.s32.totalorder %s60, %s62
    %p69 = scmp.eq.s32.totalorder %s17, 1
    %p70 = por %p68, %p69
    %p71 = scmp.ne.s32.totalorder %s62, %s63
    %p72 = scmp.eq.s32.totalorder %s17, 0
    %p73 = por %p71, %p72
    %p74 = scmp.ne.s32.totalorder %s62, %s63
    %p75 = scmp.eq.s32.totalorder %s18, 1
    %p76 = por %p74, %p75
    %p78 = scmp.ne.s32.totalorder %s63, %s77
    %p79 = scmp.eq.s32.totalorder %s18, 0
    %p80 = por %p78, %p79
    %s82 = sadd.s32 %s81, 1
    %p85 = scmp.eq.s32.totalorder %s12, 1
    %p86 = scmp.ne.s32.totalorder %s81, %s83
    %p87 = scmp.eq.s32.totalorder %s12, 0
    %p88 = por %p86, %p87
    %p89 = scmp.ne.s32.totalorder %s81, %s83
    %p90 = scmp.eq.s32.totalorder %s17, 1
    %p91 = por %p89, %p90
    %p92 = scmp.ne.s32.totalorder %s83, %s84
    %p93 = scmp.eq.s32.totalorder %s17, 0
    %p94 = por %p92, %p93
    %p95 = scmp.ne.s32.totalorder %s83, %s84
    %p96 = scmp.eq.s32.totalorder %s18, 1
    %p97 = por %p95, %p96
    %p99 = scmp.ne.s32.totalorder %s84, %s98
    %p100 = scmp.eq.s32.totalorder %s18, 0
    %p101 = por %p99, %p100
    %s103 = sadd.s32 %s102, 1
    %p106 = scmp.eq.s32.totalorder %s12, 1
    %p107 = scmp.ne.s32.totalorder %s102, %s104
    %p108 = scmp.eq.s32.totalorder %s12, 0
    %p109 = por %p107, %p108
    %p110 = scmp.ne.s32.totalorder %s102, %s104
    %p111 = scmp.eq.s32.totalorder %s17, 1
    %p112 = por %p110, %p111
    %p113 = scmp.ne.s32.totalorder %s104, %s105
    %p114 = scmp.eq.s32.totalorder %s17, 0
    %p115 = por %p113, %p114
    %p116 = scmp.ne.s32.totalorder %s104, %s105
    %p117 = scmp.eq.s32.totalorder %s18, 1
    %p118 = por %p116, %p117
    %p120 = scmp.ne.s32.totalorder %s105, %s119
    %p121 = scmp.eq.s32.totalorder %s18, 0
    %p122 = por %p120, %p121
    %s124 = sadd.s32 %s123, 1
    %p127 = scmp.eq.s32.totalorder %s12, 1
    %p128 = scmp.ne.s32.totalorder %s123, %s125
    %p129 = scmp.eq.s32.totalorder %s12, 0
    %p130 = por %p128, %p129
    %p131 = scmp.ne.s32.totalorder %s123, %s125
    %p132 = scmp.eq.s32.totalorder %s17, 1
    %p133 = por %p131, %p132
    %p134 = scmp.ne.s32.totalorder %s125, %s126
    %p135 = scmp.eq.s32.totalorder %s17, 0
    %p136 = por %p134, %p135
    %p137 = scmp.ne.s32.totalorder %s125, %s126
    %p138 = scmp.eq.s32.totalorder %s18, 1
    %p139 = por %p137, %p138
    %p141 = scmp.ne.s32.totalorder %s126, %s140
    %p142 = scmp.eq.s32.totalorder %s18, 0
    %p143 = por %p141, %p142
    %s145 = sadd.s32 %s144, 1
    %p148 = scmp.eq.s32.totalorder %s12, 1
    %p149 = scmp.ne.s32.totalorder %s144, %s146
    %p150 = scmp.eq.s32.totalorder %s12, 0
    %p151 = por %p149, %p150
    %p152 = scmp.ne.s32.totalorder %s144, %s146
    %p153 = scmp.eq.s32.totalorder %s17, 1
    %p154 = por %p152, %p153
    %p155 = scmp.ne.s32.totalorder %s146, %s147
    %p156 = scmp.eq.s32.totalorder %s17, 0
    %p157 = por %p155, %p156
    %p158 = scmp.ne.s32.totalorder %s146, %s147
    %p159 = scmp.eq.s32.totalorder %s18, 1
    %p160 = por %p158, %p159
    %p162 = scmp.ne.s32.totalorder %s147, %s161
    %p163 = scmp.eq.s32.totalorder %s18, 0
    %p164 = por %p162, %p163
    %s165 = ssub.s32 %s19, %s31
    %s166 = ssub.s32 %s20, %s27
    %s167 = sor.u32 %s165, %s166
    %p168 = scmp.eq.s32.totalorder %s167, 0
    %s170 = sadd.s32 %s169, 1
    %s171 = scalar_select %p168, %s169, %s170
    %p174 = pneg %p168
    %p175 = scmp.eq.s32.totalorder %s12, 1
    %p176 = por %p174, %p175
    %p177 = scmp.ne.s32.totalorder %s169, %s172
    %p178 = scmp.eq.s32.totalorder %s12, 0
    %p179 = por %p177, %p178
    %p180 = scmp.ne.s32.totalorder %s169, %s172
    %p181 = scmp.eq.s32.totalorder %s17, 1
    %p182 = por %p180, %p181
    %p183 = scmp.ne.s32.totalorder %s172, %s173
    %p184 = scmp.eq.s32.totalorder %s17, 0
    %p185 = por %p183, %p184
    %p186 = scmp.ne.s32.totalorder %s172, %s173
    %p187 = scmp.eq.s32.totalorder %s18, 1
    %p188 = por %p186, %p187
    %p190 = scmp.ne.s32.totalorder %s173, %s189
    %p191 = scmp.eq.s32.totalorder %s18, 0
    %p192 = por %p190, %p191
    %p193 = scmp.le.s32.totalorder 1, %s12
    %p194 = scmp.lt.s32.totalorder %s12, 3
    %p195 = pnand %p193, %p194
    %p196 = pneg %p195
    // Predicated region
    $region9: #{down_forward.1} parent=5 // pred_check
      _
    $region10: #{down_forward.1} parent=5 // pred_check_branch
      %198 = sbr.rel (%p195) target = $region12
    $region11: #{down_forward.1} parent=5 // pred_region
      %s199 = ssub.s32 %s12, 1
      // Predicated region
      $region13: #{down_forward.1} parent=11 // pred_check
        %p200 = pneg %p73
      $region14: #{down_forward.1} parent=11 // pred_check_branch
        %202 = sbr.rel (%p200) target = $region16
      $region15: #{down_forward.1} parent=11 // pred_region
        _
      $region16: #{down_forward.1} parent=11 // pred_fallthru
        _
      // Predicated region
      $region17: #{down_forward.1} parent=11 // pred_check
        %p203 = pneg %p94
      $region18: #{down_forward.1} parent=11 // pred_check_branch
        %205 = sbr.rel (%p203) target = $region20
      $region19: #{down_forward.1} parent=11 // pred_region
        _
      $region20: #{down_forward.1} parent=11 // pred_fallthru
        _
      // Predicated region
      $region21: #{down_forward.1} parent=11 // pred_check
        %p206 = pneg %p115
      $region22: #{down_forward.1} parent=11 // pred_check_branch
        %208 = sbr.rel (%p206) target = $region24
      $region23: #{down_forward.1} parent=11 // pred_region
        _
      $region24: #{down_forward.1} parent=11 // pred_fallthru
        _
      // Predicated region
      $region25: #{down_forward.1} parent=11 // pred_check
        %p209 = pneg %p136
      $region26: #{down_forward.1} parent=11 // pred_check_branch
        %211 = sbr.rel (%p209) target = $region28
      $region27: #{down_forward.1} parent=11 // pred_region
        _
      $region28: #{down_forward.1} parent=11 // pred_fallthru
        _
      // Predicated region
      $region29: #{down_forward.1} parent=11 // pred_check
        %p212 = pneg %p157
      $region30: #{down_forward.1} parent=11 // pred_check_branch
        %214 = sbr.rel (%p212) target = $region32
      $region31: #{down_forward.1} parent=11 // pred_region
        _
      $region32: #{down_forward.1} parent=11 // pred_fallthru
        _
    $region12: #{down_forward.1} parent=5 // pred_fallthru
      _
    %p215 = scmp.lt.s32.totalorder %s12, 2
    // Predicated region
    $region33: #{down_forward.1} parent=5 // pred_check
      %p216 = pneg %p215
    $region34: #{down_forward.1} parent=5 // pred_check_branch
      %218 = sbr.rel (%p216) target = $region36
    $region35: #{down_forward.1} parent=5 // pred_region
      // Predicated region
      $region37: #{down_forward.1} parent=35 // pred_check
        %p219 = pneg %p46
      $region38: #{down_forward.1} parent=35 // pred_check_branch
        %221 = sbr.rel (%p219) target = $region40
      $region39: #{down_forward.1} parent=35 // pred_region
        %p222 = scmp.lt.s32.totalorder %s19, 1
        %s223 = scalar_select %p222, %s19, 1
        %p224 = scmp.lt.s32.totalorder %s20, 0
        %s225 = scalar_select %p224, %s20, 0
        %s226 = smul.addr %s225, 2
        %s227 = smul.addr %s223, 2
        %s228 = sadd.s32 %s226, %s227
        %s229 = smul.addr %s228, 4
        %s230 = scalar_lea.vmem %s0, %s229
      $region40: #{down_forward.1} parent=35 // pred_fallthru
        _
    $region36: #{down_forward.1} parent=5 // pred_fallthru
      _
    %p231 = scmp.le.s32.totalorder 1, %s12
    %p232 = scmp.lt.s32.totalorder %s12, 3
    %p233 = pnand %p231, %p232
    %p234 = pneg %p233
    // Predicated region
    $region41: #{down_forward.1} parent=5 // pred_check
      _
    $region42: #{down_forward.1} parent=5 // pred_check_branch
      %236 = sbr.rel (%p233) target = $region44
    $region43: #{down_forward.1} parent=5 // pred_region
      %s237 = ssub.s32 %s12, 1
      %p238 = scmp.lt.s32.totalorder %s21, 1
      %s239 = scalar_select %p238, %s21, 1
      %p240 = scmp.lt.s32.totalorder %s22, 0
      %s241 = scalar_select %p240, %s22, 0
      %s242 = smul.addr %s241, 2
      %s243 = smul.addr %s239, 2
      %s244 = sadd.s32 %s242, %s243
      %s245 = smul.addr %s244, 4
      %s246 = scalar_lea.vmem %s0, %s245
      %p247 = pneg %p52
      %p248 = pneg %p49
      %p249 = pneg %p73
      %p250 = pneg %p70
      %p251 = pneg %p94
      %p252 = pneg %p91
      %p253 = pneg %p115
      %p254 = pneg %p112
      %p255 = pneg %p136
      %p256 = pneg %p133
      %p257 = pneg %p157
      %p258 = pneg %p154
      %p259 = pneg %p185
      %p260 = pneg %p182
      %p261 = scmp.lt.s32.totalorder %s21, 1
      %s262 = scalar_select %p261, %s21, 1
      %p263 = scmp.lt.s32.totalorder %s22, 0
      %s264 = scalar_select %p263, %s22, 0
      %s265 = sadd.s32 %s264, %s262
      %s266 = smul.addr %s265, 8
      %s267 = scalar_lea.vmem %s6, %s266
      %p268 = scmp.lt.s32.totalorder %s21, 1
      %s269 = scalar_select %p268, %s21, 1
      %p270 = scmp.lt.s32.totalorder %s22, 0
      %s271 = scalar_select %p270, %s22, 0
      %s272 = smul.addr %s271, 2
      %s273 = smul.addr %s269, 2
      %s274 = sadd.s32 %s272, %s273
      %s275 = smul.addr %s274, 4
      %s276 = scalar_lea.vmem %s0, %s275
      %p277 = scmp.lt.s32.totalorder %s21, 1
      %s278 = scalar_select %p277, %s21, 1
      %p279 = scmp.lt.s32.totalorder %s22, 0
      %s280 = scalar_select %p279, %s22, 0
      %s281 = sadd.s32 %s280, %s278
      %s282 = smul.addr %s281, 8
      %s283 = scalar_lea.vmem %s6, %s282
      %v285 = vld [vmem:[%s276] sm:$0xf]
      %v286 = vld [vmem:[%s276 + $0x4] sm:$0xf]
      %v287 = vld [vmem:[%s1] sm:$0xf]
      %v288 = vld [vmem:[%s2] sm:$0xff]
      %290 = vset.pattern.permute.xlu0 0
      %291 = vperm.xlu0 %290, %v288
      %v292 = vpop.permute.xlu0 %291
      %v296 = vunpack.c.l.b16 %v285
      %v297 = vunpack.c.l.b16 %v286
      %v298 = vpack.c.b16 %v297, %v296
      %vm300 = vcmask 130048
      %v302 = vsel %vm300, %v287, 0
      %304 = vmatprep.subr.bf16.mxu0 0
      %305 = vmatpush1.bf16.msra.mxu0 %v298
      %306 = vmatprep.subr.bf16.mxu0 0
      %307 = vmatpush1.bf16.msra.mxu0 0
      %308 = vmatprep.subr.bf16.mxu0 0
      %309 = vmatpush1.bf16.msra.mxu0 0
      %310 = vmatprep.subr.bf16.mxu0 0
      %311 = vmatpush1.bf16.msra.mxu0 0
      %312 = vmatprep.subr.bf16.mxu0 0
      %313 = vmatpush1.bf16.msra.mxu0 0
      %314 = vmatprep.subr.bf16.mxu0 0
      %315 = vmatpush1.bf16.msra.mxu0 0
      %316 = vmatprep.subr.bf16.mxu0 0
      %317 = vmatpush1.bf16.msra.mxu0 0
      %318 = vmatprep.subr.bf16.mxu0 0
      %319 = vmatpush1.bf16.msra.mxu0 0
      %320 = vmatprep.subr.bf16.mxu0 0
      %321 = vmatpush1.bf16.msra.mxu0 0
      %322 = vmatprep.subr.bf16.mxu0 0
      %323 = vmatpush1.bf16.msra.mxu0 0
      %324 = vmatprep.subr.bf16.mxu0 0
      %325 = vmatpush1.bf16.msra.mxu0 0
      %326 = vmatprep.subr.bf16.mxu0 0
      %327 = vmatpush1.bf16.msra.mxu0 0
      %328 = vmatprep.subr.bf16.mxu0 0
      %329 = vmatpush1.bf16.msra.mxu0 0
      %330 = vmatprep.subr.bf16.mxu0 0
      %331 = vmatpush1.bf16.msra.mxu0 0
      %332 = vmatprep.subr.bf16.mxu0 0
      %333 = vmatpush1.bf16.msra.mxu0 0
      %334 = vmatprep.subr.bf16.mxu0 0
      %335 = vmatpush1.bf16.msra.mxu0 0
      %336 = vmatprep.mubr.bf16.mxu0 0
      %337 = vmatmul.mubr.bf16.gmra.mrb[0].mxu0 %v302
      %v338 = vpop.f32.mrb[0].mxu0
      %v339 = vadd.f32 %v292, %v338
      %v340 = vpop.f32.mrb[0].mxu0
      %v341 = vpop.f32.mrb[0].mxu0
      %v342 = vpop.f32.mrb[0].mxu0
      %343 = vdwg.mxu0
      %vm344 = vcmp.gt.f32.partialorder %v339, 0.0
      %v345 = vmul.f32 %v339, 0.1
      %v346 = vsel %vm344, %v339, %v345
      %vm347 = vcmask 7168
      %348 = vst.msk [vmem:[#allocation2] sm:$0xff] %vm347, 0.0
      %vm349 = vcmask 671368
      %350 = vst.msk [vmem:[#allocation2] sm:$0xff] %vm349, 0.0
      %352 = vrot.lane.b32.xlu0 %v346, 1
      %v353 = vpop.permute.xlu0 %352
      %vm355 = vcmask 662536
      %356 = vst.msk [vmem:[#allocation2] sm:$0xff] %vm355, %v353
      %p357 = scmp.eq.s32.totalorder %s22, 0
      // Predicated region
      $region45: #{down_forward.1} parent=43 // pred_check
        %p358 = pneg %p357
      $region46: #{down_forward.1} parent=43 // pred_check_branch
        %360 = sbr.rel (%p358) target = $region48
      $region47: #{down_forward.1} parent=43 // pred_region
        %vm361 = vcmask 72712
        %362 = vst.msk [vmem:[#allocation2] sm:$0xff] %vm361, 0.0
        %vm363 = vcmask 663112
        %364 = vst.msk [vmem:[#allocation2] sm:$0xff] %vm363, 0.0
      $region48: #{down_forward.1} parent=43 // pred_fallthru
        _
      %v365 = vld [vmem:[%s5] sm:$0x1]
      %v366 = vld [vmem:[%s5 + $0x1] sm:$0x1]
      %v367 = vld [vmem:[#allocation2] sm:$0xff]
      %v368 = vpack.c.bf16 %v367, %v367
      %s369 = scalar_lea.vmem %s3, 4
      %v370 = vld [vmem:[%s369] sm:$0xf]
      %s371 = scalar_lea.vmem %s3, 16
      %v372 = vld [vmem:[%s371] sm:$0xf]
      %374 = vrot.lane.b32.xlu0 %v368, 119
      %v375 = vpop.permute.xlu0 %374
      %vm376 = vcmask 64512
      %v378 = vsel %vm376, %v372, 0
      %vm380 = vcmask 1043456
      %v382 = vsel %vm380, %v375, 0
      %384 = vmatprep.subr.bf16.mxu0 0
      %385 = vmatpush1.bf16.msra.mxu0 %v382
      %386 = vmatprep.subr.bf16.mxu0 0
      %387 = vmatpush1.bf16.msra.mxu0 0
      %388 = vmatprep.subr.bf16.mxu0 0
      %389 = vmatpush1.bf16.msra.mxu0 0
      %390 = vmatprep.subr.bf16.mxu0 0
      %391 = vmatpush1.bf16.msra.mxu0 0
      %392 = vmatprep.subr.bf16.mxu0 0
      %393 = vmatpush1.bf16.msra.mxu0 0
      %394 = vmatprep.subr.bf16.mxu0 0
      %395 = vmatpush1.bf16.msra.mxu0 0
      %396 = vmatprep.subr.bf16.mxu0 0
      %397 = vmatpush1.bf16.msra.mxu0 0
      %398 = vmatprep.subr.bf16.mxu0 0
      %399 = vmatpush1.bf16.msra.mxu0 0
      %400 = vmatprep.subr.bf16.mxu0 0
      %401 = vmatpush1.bf16.msra.mxu0 0
      %402 = vmatprep.subr.bf16.mxu0 0
      %403 = vmatpush1.bf16.msra.mxu0 0
      %404 = vmatprep.subr.bf16.mxu0 0
      %405 = vmatpush1.bf16.msra.mxu0 0
      %406 = vmatprep.subr.bf16.mxu0 0
      %407 = vmatpush1.bf16.msra.mxu0 0
      %408 = vmatprep.subr.bf16.mxu0 0
      %409 = vmatpush1.bf16.msra.mxu0 0
      %410 = vmatprep.subr.bf16.mxu0 0
      %411 = vmatpush1.bf16.msra.mxu0 0
      %412 = vmatprep.subr.bf16.mxu0 0
      %413 = vmatpush1.bf16.msra.mxu0 0
      %414 = vmatprep.subr.bf16.mxu0 0
      %415 = vmatpush1.bf16.msra.mxu0 0
      %416 = vmatprep.mubr.bf16.mxu0 0
      %417 = vmatmul.mubr.bf16.gmra.mrb[0].mxu0 %v378
      %v418 = vpop.f32.mrb[0].mxu0
      %v419 = vadd.f32 0.0, %v418
      %v420 = vpop.f32.mrb[0].mxu0
      %v421 = vpop.f32.mrb[0].mxu0
      %v422 = vpop.f32.mrb[0].mxu0
      %423 = vdwg.mxu0
      %424 = vrot.lane.b32.xlu0 %v368, 127
      %v425 = vpop.permute.xlu0 %424
      %v427 = vsel %vm376, %v370, 0
      %v430 = vsel %vm380, %v425, 0
      %432 = vmatprep.subr.bf16.mxu0 0
      %433 = vmatpush1.bf16.msra.mxu0 %v430
      %434 = vmatprep.subr.bf16.mxu0 0
      %435 = vmatpush1.bf16.msra.mxu0 0
      %436 = vmatprep.subr.bf16.mxu0 0
      %437 = vmatpush1.bf16.msra.mxu0 0
      %438 = vmatprep.subr.bf16.mxu0 0
      %439 = vmatpush1.bf16.msra.mxu0 0
      %440 = vmatprep.subr.bf16.mxu0 0
      %441 = vmatpush1.bf16.msra.mxu0 0
      %442 = vmatprep.subr.bf16.mxu0 0
      %443 = vmatpush1.bf16.msra.mxu0 0
      %444 = vmatprep.subr.bf16.mxu0 0
      %445 = vmatpush1.bf16.msra.mxu0 0
      %446 = vmatprep.subr.bf16.mxu0 0
      %447 = vmatpush1.bf16.msra.mxu0 0
      %448 = vmatprep.subr.bf16.mxu0 0
      %449 = vmatpush1.bf16.msra.mxu0 0
      %450 = vmatprep.subr.bf16.mxu0 0
      %451 = vmatpush1.bf16.msra.mxu0 0
      %452 = vmatprep.subr.bf16.mxu0 0
      %453 = vmatpush1.bf16.msra.mxu0 0
      %454 = vmatprep.subr.bf16.mxu0 0
      %455 = vmatpush1.bf16.msra.mxu0 0
      %456 = vmatprep.subr.bf16.mxu0 0
      %457 = vmatpush1.bf16.msra.mxu0 0
      %458 = vmatprep.subr.bf16.mxu0 0
      %459 = vmatpush1.bf16.msra.mxu0 0
      %460 = vmatprep.subr.bf16.mxu0 0
      %461 = vmatpush1.bf16.msra.mxu0 0
      %462 = vmatprep.subr.bf16.mxu0 0
      %463 = vmatpush1.bf16.msra.mxu0 0
      %464 = vmatprep.mubr.bf16.mxu0 0
      %465 = vmatmul.mubr.bf16.gmra.mrb[0].mxu0 %v427
      %v466 = vpop.f32.mrb[0].mxu0
      %v467 = vadd.f32 %v419, %v466
      %v468 = vpop.f32.mrb[0].mxu0
      %v469 = vpop.f32.mrb[0].mxu0
      %v470 = vpop.f32.mrb[0].mxu0
      %471 = vdwg.mxu0
      %s472 = scalar_lea.vmem %s3, 28
      %v473 = vld [vmem:[%s472] sm:$0xf]
      %474 = vrot.lane.b32.xlu0 %v368, 111
      %v475 = vpop.permute.xlu0 %474
      %v477 = vsel %vm376, %v473, 0
      %v480 = vsel %vm380, %v475, 0
      %482 = vmatprep.subr.bf16.mxu0 0
      %483 = vmatpush1.bf16.msra.mxu0 %v480
      %484 = vmatprep.subr.bf16.mxu0 0
      %485 = vmatpush1.bf16.msra.mxu0 0
      %486 = vmatprep.subr.bf16.mxu0 0
      %487 = vmatpush1.bf16.msra.mxu0 0
      %488 = vmatprep.subr.bf16.mxu0 0
      %489 = vmatpush1.bf16.msra.mxu0 0
      %490 = vmatprep.subr.bf16.mxu0 0
      %491 = vmatpush1.bf16.msra.mxu0 0
      %492 = vmatprep.subr.bf16.mxu0 0
      %493 = vmatpush1.bf16.msra.mxu0 0
      %494 = vmatprep.subr.bf16.mxu0 0
      %495 = vmatpush1.bf16.msra.mxu0 0
      %496 = vmatprep.subr.bf16.mxu0 0
      %497 = vmatpush1.bf16.msra.mxu0 0
      %498 = vmatprep.subr.bf16.mxu0 0
      %499 = vmatpush1.bf16.msra.mxu0 0
      %500 = vmatprep.subr.bf16.mxu0 0
      %501 = vmatpush1.bf16.msra.mxu0 0
      %502 = vmatprep.subr.bf16.mxu0 0
      %503 = vmatpush1.bf16.msra.mxu0 0
      %504 = vmatprep.subr.bf16.mxu0 0
      %505 = vmatpush1.bf16.msra.mxu0 0
      %506 = vmatprep.subr.bf16.mxu0 0
      %507 = vmatpush1.bf16.msra.mxu0 0
      %508 = vmatprep.subr.bf16.mxu0 0
      %509 = vmatpush1.bf16.msra.mxu0 0
      %510 = vmatprep.subr.bf16.mxu0 0
      %511 = vmatpush1.bf16.msra.mxu0 0
      %512 = vmatprep.subr.bf16.mxu0 0
      %513 = vmatpush1.bf16.msra.mxu0 0
      %514 = vmatprep.mubr.bf16.mxu0 0
      %515 = vmatmul.mubr.bf16.gmra.mrb[0].mxu0 %v477
      %v516 = vpop.f32.mrb[0].mxu0
      %v517 = vadd.f32 0.0, %v516
      %v518 = vpop.f32.mrb[0].mxu0
      %v519 = vpop.f32.mrb[0].mxu0
      %v520 = vpop.f32.mrb[0].mxu0
      %521 = vdwg.mxu0
      %v522 = vadd.f32 %v467, %v517
      %v523 = vld [vmem:[%s3] sm:$0xf]
      %s524 = scalar_lea.vmem %s3, 12
      %v525 = vld [vmem:[%s524] sm:$0xf]
      %526 = vrot.lane.b32.xlu0 %v368, 120
      %v527 = vpop.permute.xlu0 %526
      %v529 = vsel %vm376, %v525, 0
      %v532 = vsel %vm380, %v527, 0
      %534 = vmatprep.subr.bf16.mxu0 0
      %535 = vmatpush1.bf16.msra.mxu0 %v532
      %536 = vmatprep.subr.bf16.mxu0 0
      %537 = vmatpush1.bf16.msra.mxu0 0
      %538 = vmatprep.subr.bf16.mxu0 0
      %539 = vmatpush1.bf16.msra.mxu0 0
      %540 = vmatprep.subr.bf16.mxu0 0
      %541 = vmatpush1.bf16.msra.mxu0 0
      %542 = vmatprep.subr.bf16.mxu0 0
      %543 = vmatpush1.bf16.msra.mxu0 0
      %544 = vmatprep.subr.bf16.mxu0 0
      %545 = vmatpush1.bf16.msra.mxu0 0
      %546 = vmatprep.subr.bf16.mxu0 0
      %547 = vmatpush1.bf16.msra.mxu0 0
      %548 = vmatprep.subr.bf16.mxu0 0
      %549 = vmatpush1.bf16.msra.mxu0 0
      %550 = vmatprep.subr.bf16.mxu0 0
      %551 = vmatpush1.bf16.msra.mxu0 0
      %552 = vmatprep.subr.bf16.mxu0 0
      %553 = vmatpush1.bf16.msra.mxu0 0
      %554 = vmatprep.subr.bf16.mxu0 0
      %555 = vmatpush1.bf16.msra.mxu0 0
      %556 = vmatprep.subr.bf16.mxu0 0
      %557 = vmatpush1.bf16.msra.mxu0 0
      %558 = vmatprep.subr.bf16.mxu0 0
      %559 = vmatpush1.bf16.msra.mxu0 0
      %560 = vmatprep.subr.bf16.mxu0 0
      %561 = vmatpush1.bf16.msra.mxu0 0
      %562 = vmatprep.subr.bf16.mxu0 0
      %563 = vmatpush1.bf16.msra.mxu0 0
      %564 = vmatprep.subr.bf16.mxu0 0
      %565 = vmatpush1.bf16.msra.mxu0 0
      %566 = vmatprep.mubr.bf16.mxu0 0
      %567 = vmatmul.mubr.bf16.gmra.mrb[0].mxu0 %v529
      %v568 = vpop.f32.mrb[0].mxu0
      %v569 = vadd.f32 0.0, %v568
      %v570 = vpop.f32.mrb[0].mxu0
      %v571 = vpop.f32.mrb[0].mxu0
      %v572 = vpop.f32.mrb[0].mxu0
      %573 = vdwg.mxu0
      %v575 = vsel %vm376, %v523, 0
      %v578 = vsel %vm380, %v368, 0
      %580 = vmatprep.subr.bf16.mxu0 0
      %581 = vmatpush1.bf16.msra.mxu0 %v578
      %582 = vmatprep.subr.bf16.mxu0 0
      %583 = vmatpush1.bf16.msra.mxu0 0
      %584 = vmatprep.subr.bf16.mxu0 0
      %585 = vmatpush1.bf16.msra.mxu0 0
      %586 = vmatprep.subr.bf16.mxu0 0
      %587 = vmatpush1.bf16.msra.mxu0 0
      %588 = vmatprep.subr.bf16.mxu0 0
      %589 = vmatpush1.bf16.msra.mxu0 0
      %590 = vmatprep.subr.bf16.mxu0 0
      %591 = vmatpush1.bf16.msra.mxu0 0
      %592 = vmatprep.subr.bf16.mxu0 0
      %593 = vmatpush1.bf16.msra.mxu0 0
      %594 = vmatprep.subr.bf16.mxu0 0
      %595 = vmatpush1.bf16.msra.mxu0 0
      %596 = vmatprep.subr.bf16.mxu0 0
      %597 = vmatpush1.bf16.msra.mxu0 0
      %598 = vmatprep.subr.bf16.mxu0 0
      %599 = vmatpush1.bf16.msra.mxu0 0
      %600 = vmatprep.subr.bf16.mxu0 0
      %601 = vmatpush1.bf16.msra.mxu0 0
      %602 = vmatprep.subr.bf16.mxu0 0
      %603 = vmatpush1.bf16.msra.mxu0 0
      %604 = vmatprep.subr.bf16.mxu0 0
      %605 = vmatpush1.bf16.msra.mxu0 0
      %606 = vmatprep.subr.bf16.mxu0 0
      %607 = vmatpush1.bf16.msra.mxu0 0
      %608 = vmatprep.subr.bf16.mxu0 0
      %609 = vmatpush1.bf16.msra.mxu0 0
      %610 = vmatprep.subr.bf16.mxu0 0
      %611 = vmatpush1.bf16.msra.mxu0 0
      %612 = vmatprep.mubr.bf16.mxu0 0
      %613 = vmatmul.mubr.bf16.gmra.mrb[0].mxu0 %v575
      %v614 = vpop.f32.mrb[0].mxu0
      %v615 = vadd.f32 %v569, %v614
      %v616 = vpop.f32.mrb[0].mxu0
      %v617 = vpop.f32.mrb[0].mxu0
      %v618 = vpop.f32.mrb[0].mxu0
      %619 = vdwg.mxu0
      %s620 = scalar_lea.vmem %s3, 24
      %v621 = vld [vmem:[%s620] sm:$0xf]
      %622 = vrot.lane.b32.xlu0 %v368, 112
      %v623 = vpop.permute.xlu0 %622
      %v625 = vsel %vm376, %v621, 0
      %v628 = vsel %vm380, %v623, 0
      %630 = vmatprep.subr.bf16.mxu0 0
      %631 = vmatpush1.bf16.msra.mxu0 %v628
      %632 = vmatprep.subr.bf16.mxu0 0
      %633 = vmatpush1.bf16.msra.mxu0 0
      %634 = vmatprep.subr.bf16.mxu0 0
      %635 = vmatpush1.bf16.msra.mxu0 0
      %636 = vmatprep.subr.bf16.mxu0 0
      %637 = vmatpush1.bf16.msra.mxu0 0
      %638 = vmatprep.subr.bf16.mxu0 0
      %639 = vmatpush1.bf16.msra.mxu0 0
      %640 = vmatprep.subr.bf16.mxu0 0
      %641 = vmatpush1.bf16.msra.mxu0 0
      %642 = vmatprep.subr.bf16.mxu0 0
      %643 = vmatpush1.bf16.msra.mxu0 0
      %644 = vmatprep.subr.bf16.mxu0 0
      %645 = vmatpush1.bf16.msra.mxu0 0
      %646 = vmatprep.subr.bf16.mxu0 0
      %647 = vmatpush1.bf16.msra.mxu0 0
      %648 = vmatprep.subr.bf16.mxu0 0
      %649 = vmatpush1.bf16.msra.mxu0 0
      %650 = vmatprep.subr.bf16.mxu0 0
      %651 = vmatpush1.bf16.msra.mxu0 0
      %652 = vmatprep.subr.bf16.mxu0 0
      %653 = vmatpush1.bf16.msra.mxu0 0
      %654 = vmatprep.subr.bf16.mxu0 0
      %655 = vmatpush1.bf16.msra.mxu0 0
      %656 = vmatprep.subr.bf16.mxu0 0
      %657 = vmatpush1.bf16.msra.mxu0 0
      %658 = vmatprep.subr.bf16.mxu0 0
      %659 = vmatpush1.bf16.msra.mxu0 0
      %660 = vmatprep.subr.bf16.mxu0 0
      %661 = vmatpush1.bf16.msra.mxu0 0
      %662 = vmatprep.mubr.bf16.mxu0 0
      %663 = vmatmul.mubr.bf16.gmra.mrb[0].mxu0 %v625
      %v664 = vpop.f32.mrb[0].mxu0
      %v665 = vadd.f32 0.0, %v664
      %v666 = vpop.f32.mrb[0].mxu0
      %v667 = vpop.f32.mrb[0].mxu0
      %v668 = vpop.f32.mrb[0].mxu0
      %669 = vdwg.mxu0
      %v670 = vadd.f32 %v615, %v665
      %v671 = vlaneseq
      %v672 = vshrl.u32 %v671, 7
      %v673 = vsub.s32 0, %v672
      %v674 = vrot.slane %v365, %v673
      %v675 = vmul.f32 %v670, %v674
      %v676 = vadd.f32 %v522, %v675
      %s677 = scalar_lea.vmem %s3, 8
      %v678 = vld [vmem:[%s677] sm:$0xf]
      %s679 = scalar_lea.vmem %s3, 20
      %v680 = vld [vmem:[%s679] sm:$0xf]
      %681 = vrot.lane.b32.xlu0 %v368, 118
      %v682 = vpop.permute.xlu0 %681
      %v684 = vsel %vm376, %v680, 0
      %v687 = vsel %vm380, %v682, 0
      %689 = vmatprep.subr.bf16.mxu0 0
      %690 = vmatpush1.bf16.msra.mxu0 %v687
      %691 = vmatprep.subr.bf16.mxu0 0
      %692 = vmatpush1.bf16.msra.mxu0 0
      %693 = vmatprep.subr.bf16.mxu0 0
      %694 = vmatpush1.bf16.msra.mxu0 0
      %695 = vmatprep.subr.bf16.mxu0 0
      %696 = vmatpush1.bf16.msra.mxu0 0
      %697 = vmatprep.subr.bf16.mxu0 0
      %698 = vmatpush1.bf16.msra.mxu0 0
      %699 = vmatprep.subr.bf16.mxu0 0
      %700 = vmatpush1.bf16.msra.mxu0 0
      %701 = vmatprep.subr.bf16.mxu0 0
      %702 = vmatpush1.bf16.msra.mxu0 0
      %703 = vmatprep.subr.bf16.mxu0 0
      %704 = vmatpush1.bf16.msra.mxu0 0
      %705 = vmatprep.subr.bf16.mxu0 0
      %706 = vmatpush1.bf16.msra.mxu0 0
      %707 = vmatprep.subr.bf16.mxu0 0
      %708 = vmatpush1.bf16.msra.mxu0 0
      %709 = vmatprep.subr.bf16.mxu0 0
      %710 = vmatpush1.bf16.msra.mxu0 0
      %711 = vmatprep.subr.bf16.mxu0 0
      %712 = vmatpush1.bf16.msra.mxu0 0
      %713 = vmatprep.subr.bf16.mxu0 0
      %714 = vmatpush1.bf16.msra.mxu0 0
      %715 = vmatprep.subr.bf16.mxu0 0
      %716 = vmatpush1.bf16.msra.mxu0 0
      %717 = vmatprep.subr.bf16.mxu0 0
      %718 = vmatpush1.bf16.msra.mxu0 0
      %719 = vmatprep.subr.bf16.mxu0 0
      %720 = vmatpush1.bf16.msra.mxu0 0
      %721 = vmatprep.mubr.bf16.mxu0 0
      %722 = vmatmul.mubr.bf16.gmra.mrb[0].mxu0 %v684
      %v723 = vpop.f32.mrb[0].mxu0
      %v724 = vadd.f32 0.0, %v723
      %v725 = vpop.f32.mrb[0].mxu0
      %v726 = vpop.f32.mrb[0].mxu0
      %v727 = vpop.f32.mrb[0].mxu0
      %728 = vdwg.mxu0
      %729 = vrot.lane.b32.xlu0 %v368, 126
      %v730 = vpop.permute.xlu0 %729
      %v732 = vsel %vm376, %v678, 0
      %v735 = vsel %vm380, %v730, 0
      %737 = vmatprep.subr.bf16.mxu0 0
      %738 = vmatpush1.bf16.msra.mxu0 %v735
      %739 = vmatprep.subr.bf16.mxu0 0
      %740 = vmatpush1.bf16.msra.mxu0 0
      %741 = vmatprep.subr.bf16.mxu0 0
      %742 = vmatpush1.bf16.msra.mxu0 0
      %743 = vmatprep.subr.bf16.mxu0 0
      %744 = vmatpush1.bf16.msra.mxu0 0
      %745 = vmatprep.subr.bf16.mxu0 0
      %746 = vmatpush1.bf16.msra.mxu0 0
      %747 = vmatprep.subr.bf16.mxu0 0
      %748 = vmatpush1.bf16.msra.mxu0 0
      %749 = vmatprep.subr.bf16.mxu0 0
      %750 = vmatpush1.bf16.msra.mxu0 0
      %751 = vmatprep.subr.bf16.mxu0 0
      %752 = vmatpush1.bf16.msra.mxu0 0
      %753 = vmatprep.subr.bf16.mxu0 0
      %754 = vmatpush1.bf16.msra.mxu0 0
      %755 = vmatprep.subr.bf16.mxu0 0
      %756 = vmatpush1.bf16.msra.mxu0 0
      %757 = vmatprep.subr.bf16.mxu0 0
      %758 = vmatpush1.bf16.msra.mxu0 0
      %759 = vmatprep.subr.bf16.mxu0 0
      %760 = vmatpush1.bf16.msra.mxu0 0
      %761 = vmatprep.subr.bf16.mxu0 0
      %762 = vmatpush1.bf16.msra.mxu0 0
      %763 = vmatprep.subr.bf16.mxu0 0
      %764 = vmatpush1.bf16.msra.mxu0 0
      %765 = vmatprep.subr.bf16.mxu0 0
      %766 = vmatpush1.bf16.msra.mxu0 0
      %767 = vmatprep.subr.bf16.mxu0 0
      %768 = vmatpush1.bf16.msra.mxu0 0
      %769 = vmatprep.mubr.bf16.mxu0 0
      %770 = vmatmul.mubr.bf16.gmra.mrb[0].mxu0 %v732
      %v771 = vpop.f32.mrb[0].mxu0
      %v772 = vadd.f32 %v724, %v771
      %v773 = vpop.f32.mrb[0].mxu0
      %v774 = vpop.f32.mrb[0].mxu0
      %v775 = vpop.f32.mrb[0].mxu0
      %776 = vdwg.mxu0
      %s777 = scalar_lea.vmem %s3, 32
      %v778 = vld [vmem:[%s777] sm:$0xf]
      %779 = vrot.lane.b32.xlu0 %v368, 110
      %v780 = vpop.permute.xlu0 %779
      %v782 = vsel %vm376, %v778, 0
      %v785 = vsel %vm380, %v780, 0
      %787 = vmatprep.subr.bf16.mxu0 0
      %788 = vmatpush1.bf16.msra.mxu0 %v785
      %789 = vmatprep.subr.bf16.mxu0 0
      %790 = vmatpush1.bf16.msra.mxu0 0
      %791 = vmatprep.subr.bf16.mxu0 0
      %792 = vmatpush1.bf16.msra.mxu0 0
      %793 = vmatprep.subr.bf16.mxu0 0
      %794 = vmatpush1.bf16.msra.mxu0 0
      %795 = vmatprep.subr.bf16.mxu0 0
      %796 = vmatpush1.bf16.msra.mxu0 0
      %797 = vmatprep.subr.bf16.mxu0 0
      %798 = vmatpush1.bf16.msra.mxu0 0
      %799 = vmatprep.subr.bf16.mxu0 0
      %800 = vmatpush1.bf16.msra.mxu0 0
      %801 = vmatprep.subr.bf16.mxu0 0
      %802 = vmatpush1.bf16.msra.mxu0 0
      %803 = vmatprep.subr.bf16.mxu0 0
      %804 = vmatpush1.bf16.msra.mxu0 0
      %805 = vmatprep.subr.bf16.mxu0 0
      %806 = vmatpush1.bf16.msra.mxu0 0
      %807 = vmatprep.subr.bf16.mxu0 0
      %808 = vmatpush1.bf16.msra.mxu0 0
      %809 = vmatprep.subr.bf16.mxu0 0
      %810 = vmatpush1.bf16.msra.mxu0 0
      %811 = vmatprep.subr.bf16.mxu0 0
      %812 = vmatpush1.bf16.msra.mxu0 0
      %813 = vmatprep.subr.bf16.mxu0 0
      %814 = vmatpush1.bf16.msra.mxu0 0
      %815 = vmatprep.subr.bf16.mxu0 0
      %816 = vmatpush1.bf16.msra.mxu0 0
      %817 = vmatprep.subr.bf16.mxu0 0
      %818 = vmatpush1.bf16.msra.mxu0 0
      %819 = vmatprep.mubr.bf16.mxu0 0
      %820 = vmatmul.mubr.bf16.gmra.mrb[0].mxu0 %v782
      %v821 = vpop.f32.mrb[0].mxu0
      %v822 = vadd.f32 0.0, %v821
      %v823 = vpop.f32.mrb[0].mxu0
      %v824 = vpop.f32.mrb[0].mxu0
      %v825 = vpop.f32.mrb[0].mxu0
      %826 = vdwg.mxu0
      %v827 = vadd.f32 %v772, %v822
      %v828 = vlaneseq
      %v829 = vshrl.u32 %v828, 7
      %v830 = vsub.s32 0, %v829
      %v831 = vrot.slane %v366, %v830
      %v832 = vmul.f32 %v827, %v831
      %v833 = vadd.f32 %v676, %v832
      %v834 = vld [vmem:[%s4] sm:$0xff]
      %836 = vset.pattern.permute.xlu0 0
      %837 = vperm.xlu0 %836, %v834
      %v838 = vpop.permute.xlu0 %837
      %v840 = vadd.f32 %v833, %v838
      %vm841 = vcmask 523264
      %842 = vst.msk [vmem:[%s283] sm:$0xff] %vm841, %v840
      %p843 = scmp.lt.s32.totalorder %s21, 1
      %s844 = scalar_select %p843, %s21, 1
      %p845 = scmp.lt.s32.totalorder %s22, 0
      %s846 = scalar_select %p845, %s22, 0
      %s847 = sadd.s32 %s846, %s844
      %s848 = smul.addr %s847, 8
      %s849 = scalar_lea.vmem %s6, %s848
      // Predicated region
      $region49: #{down_forward.1} parent=43 // pred_check
        %p850 = pneg %p182
      $region50: #{down_forward.1} parent=43 // pred_check_branch
        %852 = sbr.rel (%p850) target = $region52
      $region51: #{down_forward.1} parent=43 // pred_region
        _
      $region52: #{down_forward.1} parent=43 // pred_fallthru
        _
    $region44: #{down_forward.1} parent=5 // pred_fallthru
      _
    %p853 = scmp.le.s32.totalorder 2, %s12
    // Predicated region
    $region53: #{down_forward.1} parent=5 // pred_check
      %p854 = pneg %p853
    $region54: #{down_forward.1} parent=5 // pred_check_branch
      %856 = sbr.rel (%p854) target = $region56
    $region55: #{down_forward.1} parent=5 // pred_region
      %s857 = ssub.s32 %s12, 2
      // Predicated region
      $region57: #{down_forward.1} parent=55 // pred_check
        %p858 = pneg %p188
      $region58: #{down_forward.1} parent=55 // pred_check_branch
        %860 = sbr.rel (%p858) target = $region60
      $region59: #{down_forward.1} parent=55 // pred_region
        %p861 = scmp.lt.s32.totalorder %s23, 1
        %s862 = scalar_select %p861, %s23, 1
        %p863 = scmp.lt.s32.totalorder %s24, 0
        %s864 = scalar_select %p863, %s24, 0
        %s865 = sadd.s32 %s864, %s862
        %s866 = smul.addr %s865, 8
        %s867 = scalar_lea.vmem %s6, %s866
      $region60: #{down_forward.1} parent=55 // pred_fallthru
        _
    $region56: #{down_forward.1} parent=5 // pred_fallthru
      _
  $region6: #{down_forward.1} parent=0 // loop_footer
    %s16 = sadd.s32 1, %s12
  $region7: #{down_forward.1} parent=0 // loop_footer_branch
    %11 = sbr.rel target = $region3
  $region8: #{down_forward.1} parent=0 // loop_exit
    _

</llo_original>
